<compile_context>
chip_gen: v7x
topology: tpu7x:2x2x1
jax: 0.10.0
libtpu: 0.0.40
codegen_flags: <defaults>
</compile_context>

<pallas_src>
import jax
import jax.numpy as jnp
from jax.experimental import pallas as pl
from jax.experimental.pallas import tpu as pltpu


def _hardsigmoid_mul_kernel(gate_ref, x_ref, o_ref):
    # gate_ref: (1, 1, C), x_ref / o_ref: (1, TILE_HW, C)
    # Compute in f32 (safe on v5e which has no bf16 VPU path); cast on store.
    g = gate_ref[...].astype(jnp.float32)
    # PyTorch Hardsigmoid: clamp(x/6 + 1/2, 0, 1)
    hs = jnp.clip(g * (1.0 / 6.0) + 0.5, 0.0, 1.0)        # (1, 1, C)
    x = x_ref[...].astype(jnp.float32)                     # (1, T, C)
    o_ref[...] = (hs * x).astype(o_ref.dtype)              # sublane broadcast


def _pick_tile_hw(hw, c, itemsize, budget_bytes):
    """Largest sublane tile that keeps (x_in + out) x double-buffer under budget.

    Must be a multiple of 8 that divides hw, or the full hw dim (the (8,128)
    block rule allows block dim == full array dim).
    """
    def fits(t):
        return 4 * t * c * itemsize <= budget_bytes  # 2 operands x 2 buffers

    if hw % 8 != 0 or fits(hw):
        return hw
    best = 8
    t = 8
    while t <= hw:
        if hw % t == 0 and fits(t):
            best = t
        t += 8
    return best


def hardsigmoid_mul(x114, x110, *, tile_budget_bytes=8 * 1024 * 1024):
    """x114: (N, C, 1, 1) gate pre-activation, x110: (N, C, H, W) -> (N, C, H, W)."""
    n, c, h, w = x110.shape
    assert x114.shape == (n, c, 1, 1)
    hw = h * w

    # Channels-on-lanes: (N, H*W, C); gate as (N, 1, C).
    x_lanes = jnp.transpose(x110, (0, 2, 3, 1)).reshape(n, hw, c)
    gate = x114.reshape(n, 1, c)

    tile_hw = _pick_tile_hw(hw, c, x110.dtype.itemsize, tile_budget_bytes)
    grid = (n, pl.cdiv(hw, tile_hw))

    out = pl.pallas_call(
        _hardsigmoid_mul_kernel,
        out_shape=jax.ShapeDtypeStruct((n, hw, c), x110.dtype),
        grid=grid,
        in_specs=[
            pl.BlockSpec((1, 1, c), lambda b, i: (b, 0, 0)),        # gate row
            pl.BlockSpec((1, tile_hw, c), lambda b, i: (b, i, 0)),  # x tile
        ],
        out_specs=pl.BlockSpec((1, tile_hw, c), lambda b, i: (b, i, 0)),
        compiler_params=pltpu.CompilerParams(
            dimension_semantics=("parallel", "parallel"),
            vmem_limit_bytes=32 * 1024 * 1024,
        ),
    )(gate, x_lanes)

    return jnp.transpose(out.reshape(n, h, w, c), (0, 3, 1, 2))


def _ref(x114, x110):
    return jnp.clip(x114 / 6.0 + 0.5, 0.0, 1.0) * x110


if __name__ == "__main__":
    key = jax.random.PRNGKey(0)
    k1, k2, k3, k4 = jax.random.split(key, 4)

    # Shapes from the module's forward: (1, 288, 7, 7) gated by (1, 288, 1, 1).
    x110 = jax.random.normal(k1, (1, 288, 7, 7), dtype=jnp.float32)
    x114 = jax.random.normal(k2, (1, 288, 1, 1), dtype=jnp.float32)

    out = jax.block_until_ready(hardsigmoid_mul(x114, x110))
    ref = _ref(x114, x110)
    assert out.shape == (1, 288, 7, 7)
    assert out.dtype == x110.dtype
    assert jnp.allclose(out, ref, atol=1e-6, rtol=1e-6)

    # Second check: batch > 1 + multi-tile grid (small budget forces tiling).
    xb = jax.random.normal(k3, (2, 128, 16, 16), dtype=jnp.float32)
    gb = jax.random.normal(k4, (2, 128, 1, 1), dtype=jnp.float32)
    outb = jax.block_until_ready(
        hardsigmoid_mul(gb, xb, tile_budget_bytes=128 * 1024))
    assert jnp.allclose(outb, _ref(gb, xb), atol=1e-6, rtol=1e-6)

    print("KERNEL_OK")
</pallas_src>

<mosaic_0001>
module attributes {stable_mosaic.version = 11 : i64} {
  func.func @_hardsigmoid_mul_kernel(%arg0: i32, %arg1: i32, %arg2: memref<1x1x288xf32, #tpu.memory_space<vmem>>, %arg3: memref<1x49x288xf32, #tpu.memory_space<vmem>>, %arg4: memref<1x49x288xf32, #tpu.memory_space<vmem>>) attributes {dimension_semantics = [#tpu.dimension_semantics<parallel>, #tpu.dimension_semantics<parallel>], iteration_bounds = array<i64: 1, 1>, scalar_prefetch = 0 : i64, scratch_operands = 0 : i64, tpu.core_type = #tpu.core_type<tc>, window_params = [{transform_indices = @transform_0, window_bounds = array<i64: 1, 1, 288>}, {transform_indices = @transform_1, window_bounds = array<i64: 1, 49, 288>}, {transform_indices = @transform_2, window_bounds = array<i64: 1, 49, 288>}]} {
    %c0 = arith.constant 0 : index
    %c0_0 = arith.constant 0 : index
    %c0_1 = arith.constant 0 : index
    %0 = vector.load %arg2[%c0, %c0_0, %c0_1] : memref<1x1x288xf32, #tpu.memory_space<vmem>>, vector<1x1x288xf32>
    %cst = arith.constant 0.166666672 : f32
    %1 = vector.broadcast %cst : f32 to vector<1x1x288xf32>
    %2 = arith.mulf %0, %1 : vector<1x1x288xf32>
    %cst_2 = arith.constant 5.000000e-01 : f32
    %3 = vector.broadcast %cst_2 : f32 to vector<1x1x288xf32>
    %4 = arith.addf %2, %3 : vector<1x1x288xf32>
    %cst_3 = arith.constant 0.000000e+00 : f32
    %cst_4 = arith.constant 1.000000e+00 : f32
    %5 = vector.broadcast %cst_3 : f32 to vector<1x1x288xf32>
    %6 = arith.maximumf %5, %4 : vector<1x1x288xf32>
    %7 = vector.broadcast %cst_4 : f32 to vector<1x1x288xf32>
    %8 = arith.minimumf %7, %6 : vector<1x1x288xf32>
    %c0_5 = arith.constant 0 : index
    %c0_6 = arith.constant 0 : index
    %c0_7 = arith.constant 0 : index
    %9 = vector.load %arg3[%c0_5, %c0_6, %c0_7] : memref<1x49x288xf32, #tpu.memory_space<vmem>>, vector<1x49x288xf32>
    %10 = vector.broadcast %8 : vector<1x1x288xf32> to vector<1x49x288xf32>
    %11 = arith.mulf %10, %9 : vector<1x49x288xf32>
    %c0_8 = arith.constant 0 : index
    %c0_9 = arith.constant 0 : index
    %c0_10 = arith.constant 0 : index
    %12 = vector.load %arg4[%c0_8, %c0_9, %c0_10] : memref<1x49x288xf32, #tpu.memory_space<vmem>>, vector<1x49x288xf32>
    tpu.vector_store %arg4[%c0_8, %c0_9, %c0_10], %11 {strides = array<i32>} : memref<1x49x288xf32, #tpu.memory_space<vmem>>, vector<1x49x288xf32>,
    return
  }
  func.func @transform_0(%arg0: i32, %arg1: i32) -> (i32, i32, i32) {
    %c0_i32 = arith.constant 0 : i32
    %c0_i32_0 = arith.constant 0 : i32
    %c0_i32_1 = arith.constant 0 : i32
    return %arg0, %c0_i32, %c0_i32_0 : i32, i32, i32
  }
  func.func @transform_1(%arg0: i32, %arg1: i32) -> (i32, i32, i32) {
    %c0_i32 = arith.constant 0 : i32
    %c0_i32_0 = arith.constant 0 : i32
    return %arg0, %arg1, %c0_i32 : i32, i32, i32
  }
  func.func @transform_2(%arg0: i32, %arg1: i32) -> (i32, i32, i32) {
    %c0_i32 = arith.constant 0 : i32
    %c0_i32_0 = arith.constant 0 : i32
    return %arg0, %arg1, %c0_i32 : i32, i32, i32
  }
}

</mosaic_0001>

<llo_original>
// kernel: tpu_custom_call.1
$region0: #{tpu_custom_call.1}
  #allocation0 [shape = 'u32[]', space=smem, size = 0x4, offset = 0x4, fixed_abs, tag = 'smem constant byte address 0x4 - core index']
  #allocation1 [shape = 'u32[144,128]{1,0:T(1,128)}', space=vmem, size = 0x12000, scoped, tag = 'internal scratch']
  %s0 = inlined_call_operand.vmem [shape: f32[1,1,288], index: 0, kind: input, shape index: {}]
  %s1 = inlined_call_operand.vmem [shape: f32[1,49,288], index: 1, kind: input, shape index: {}]
  %s2 = inlined_call_operand.vmem [shape: f32[1,49,288], index: 2, kind: output, shape index: {}]
  %s3 = sld [smem:[#allocation0]]
  $region18: #{tpu_custom_call.1} parent=0
    _
  %s5 = ssub.s32 1, %s3
  %s6 = scalar_select 0, %s5, %s3
  // Predicated region
  $region2: #{tpu_custom_call.1} parent=0 // pred_check
    _
  $region3: #{tpu_custom_call.1} parent=0 // pred_check_branch
    %8 = sbr.rel (0) target = $region5
  $region4: #{tpu_custom_call.1} parent=0 // pred_region
    _
  $region5: #{tpu_custom_call.1} parent=0 // pred_fallthru
    _
  // Predicated region
  $region6: #{tpu_custom_call.1} parent=0 // pred_check
    _
  $region7: #{tpu_custom_call.1} parent=0 // pred_check_branch
    %10 = sbr.rel (0) target = $region9
  $region8: #{tpu_custom_call.1} parent=0 // pred_region
    _
  $region9: #{tpu_custom_call.1} parent=0 // pred_fallthru
    _
  %v11 = vld [vmem:[%s0] sm:$0x7]
  %v12 = vmul.f32 %v11, 0.16666667
  %v13 = vadd.f32 %v12, 0.5
  %v14 = vmax.f32 %v13, 0.0
  %v15 = vmin.f32 %v14, 1.0
  %v16 = vld [vmem:[%s1] sm:$0xff]
  %v17 = vld [vmem:[%s1 + $0x8] sm:$0xff]
  %v18 = vld [vmem:[%s1 + $0x10] sm:$0xff]
  %v19 = vld [vmem:[%s1 + $0x18] sm:$0xff]
  %v20 = vld [vmem:[%s1 + $0x20] sm:$0xff]
  %v21 = vld [vmem:[%s1 + $0x28] sm:$0xff]
  %v22 = vld [vmem:[%s1 + $0x30] sm:$0xff]
  %v23 = vld [vmem:[%s1 + $0x38] sm:$0xff]
  %v24 = vld [vmem:[%s1 + $0x40] sm:$0xff]
  %v25 = vld [vmem:[%s1 + $0x48] sm:$0xff]
  %v26 = vld [vmem:[%s1 + $0x50] sm:$0xff]
  %v27 = vld [vmem:[%s1 + $0x58] sm:$0xff]
  %v28 = vld [vmem:[%s1 + $0x60] sm:$0xff]
  %v29 = vld [vmem:[%s1 + $0x68] sm:$0xff]
  %v30 = vld [vmem:[%s1 + $0x70] sm:$0xff]
  %v31 = vld [vmem:[%s1 + $0x78] sm:$0xff]
  %v32 = vld [vmem:[%s1 + $0x80] sm:$0xff]
  %v33 = vld [vmem:[%s1 + $0x88] sm:$0xff]
  %v34 = vld [vmem:[%s1 + $0x90] sm:$0x1]
  %v35 = vld [vmem:[%s1 + $0x98] sm:$0x1]
  %v36 = vld [vmem:[%s1 + $0xa0] sm:$0x1]
  %v38 = vlaneseq
  %v39 = vshrl.u32 %v38, 7
  %v40 = vsub.s32 0, %v39
  %v41 = vrot.slane %v15, %v40
  %v42 = vlaneseq
  %v43 = vshrl.u32 %v42, 7
  %v44 = vsub.s32 1, %v43
  %v45 = vrot.slane %v15, %v44
  %v46 = vlaneseq
  %v47 = vshrl.u32 %v46, 7
  %v48 = vsub.s32 2, %v47
  %v49 = vrot.slane %v15, %v48
  %v53 = vmul.f32 %v41, %v16
  %v54 = vmul.f32 %v45, %v17
  %v55 = vmul.f32 %v49, %v18
  %v56 = vmul.f32 %v41, %v19
  %v57 = vmul.f32 %v45, %v20
  %v58 = vmul.f32 %v49, %v21
  %v59 = vmul.f32 %v41, %v22
  %v60 = vmul.f32 %v45, %v23
  %v61 = vmul.f32 %v49, %v24
  %v62 = vmul.f32 %v41, %v25
  %v63 = vmul.f32 %v45, %v26
  %v64 = vmul.f32 %v49, %v27
  %v65 = vmul.f32 %v41, %v28
  %v66 = vmul.f32 %v45, %v29
  %v67 = vmul.f32 %v49, %v30
  %v68 = vmul.f32 %v41, %v31
  %v69 = vmul.f32 %v45, %v32
  %v70 = vmul.f32 %v49, %v33
  %v71 = vmul.f32 %v41, %v34
  %v72 = vmul.f32 %v45, %v35
  %v73 = vmul.f32 %v49, %v36
  %74 = vst [vmem:[%s2] sm:$0xff] %v53
  %75 = vst [vmem:[%s2 + $0x8] sm:$0xff] %v54
  %vm76 = vcmask 261120
  %77 = vst.msk [vmem:[%s2 + $0x10] sm:$0xff] %vm76, %v55
  %78 = vst [vmem:[%s2 + $0x18] sm:$0xff] %v56
  %79 = vst [vmem:[%s2 + $0x20] sm:$0xff] %v57
  %80 = vst.msk [vmem:[%s2 + $0x28] sm:$0xff] %vm76, %v58
  %81 = vst [vmem:[%s2 + $0x30] sm:$0xff] %v59
  %82 = vst [vmem:[%s2 + $0x38] sm:$0xff] %v60
  %83 = vst.msk [vmem:[%s2 + $0x40] sm:$0xff] %vm76, %v61
  %84 = vst [vmem:[%s2 + $0x48] sm:$0xff] %v62
  %85 = vst [vmem:[%s2 + $0x50] sm:$0xff] %v63
  %86 = vst.msk [vmem:[%s2 + $0x58] sm:$0xff] %vm76, %v64
  %87 = vst [vmem:[%s2 + $0x60] sm:$0xff] %v65
  %88 = vst [vmem:[%s2 + $0x68] sm:$0xff] %v66
  %89 = vst.msk [vmem:[%s2 + $0x70] sm:$0xff] %vm76, %v67
  %90 = vst [vmem:[%s2 + $0x78] sm:$0xff] %v68
  %91 = vst [vmem:[%s2 + $0x80] sm:$0xff] %v69
  %92 = vst.msk [vmem:[%s2 + $0x88] sm:$0xff] %vm76, %v70
  %93 = vst [vmem:[%s2 + $0x90] sm:$0x1] %v71
  %94 = vst [vmem:[%s2 + $0x98] sm:$0x1] %v72
  %vm95 = vcmask 253952
  %96 = vst.msk [vmem:[%s2 + $0xa0] sm:$0x1] %vm95, %v73
  // Predicated region
  $region10: #{tpu_custom_call.1} parent=0 // pred_check
    _
  $region11: #{tpu_custom_call.1} parent=0 // pred_check_branch
    %98 = sbr.rel (0) target = $region13
  $region12: #{tpu_custom_call.1} parent=0 // pred_region
    _
  $region13: #{tpu_custom_call.1} parent=0 // pred_fallthru
    _
  // Predicated region
  $region14: #{tpu_custom_call.1} parent=0 // pred_check
    _
  $region15: #{tpu_custom_call.1} parent=0 // pred_check_branch
    %100 = sbr.rel (0) target = $region17
  $region16: #{tpu_custom_call.1} parent=0 // pred_region
    _
  $region17: #{tpu_custom_call.1} parent=0 // pred_fallthru
    _

</llo_original>
